<compile_context>
chip_gen: v6e
topology: v6e:2x2x1
jax: 0.10.0
libtpu: 0.0.40
codegen_flags: <defaults>
</compile_context>

<pallas_src>
import jax
import jax.numpy as jnp
from jax.experimental import pallas as pl
from jax.experimental.pallas import tpu as pltpu

LANE = 128
MAX_LANE_W = 8192                     # cap on the lane-dense row width
_TARGET_BLOCK_BYTES = 4 * 1024 * 1024  # ~4 MiB blocks -> 16 MiB live VMEM (2 bufs x in+out)
_VMEM_LIMIT_BYTES = 32 * 1024 * 1024   # <= physical VMEM on v5e/v6e (128 MiB) and v7x (64 MiB)


def _copy_kernel(x_ref, o_ref):
    # Plain lane-dense VMEM tile copy.
    o_ref[...] = x_ref[...]


def _lane_width(n: int) -> int:
    """Largest multiple of 128 that divides n, capped at MAX_LANE_W."""
    q = n // LANE
    max_mult = min(q, MAX_LANE_W // LANE)
    for d in range(max_mult, 0, -1):
        if q % d == 0:
            return d * LANE
    return LANE


def _identity_copy(x: jax.Array, *, target_block_bytes: int = _TARGET_BLOCK_BYTES) -> jax.Array:
    """Materialize y = x in a fresh buffer via a tiled Pallas copy."""
    orig_shape = x.shape
    n = x.size
    itemsize = jnp.dtype(x.dtype).itemsize

    if n % LANE != 0:
        # Ragged fallback (rare): one whole-array block, no pad/slice round trips.
        # Block shape == full array dims is always legal regardless of (8,128).
        # TODO(synk): for very large ragged tensors, copy the 128-aligned bulk with
        # the slab path below and handle the <128-element tail separately.
        return pl.pallas_call(
            _copy_kernel,
            out_shape=jax.ShapeDtypeStruct(orig_shape, x.dtype),
            cost_estimate=pl.CostEstimate(
                flops=0, transcendentals=0, bytes_accessed=2 * n * itemsize),
        )(x)

    # Lane-dense slab: widest last dim (multiple of 128) that divides the flat size.
    flat = x.reshape(-1)               # metadata-only for contiguous inputs
    lane_w = _lane_width(n)
    rows = n // lane_w
    slab = flat.reshape(rows, lane_w)

    # Rows per block: multiple of 32 satisfies the sublane minimum for
    # f32 (8), bf16 (16) and int8/fp8 (32) alike.
    max_rows = max(32, (target_block_bytes // (lane_w * itemsize)) // 32 * 32)
    # Keep at least 2 grid steps for mid/large inputs so v7x's two TensorCores
    # both get work ("parallel" shards grid steps across TCs; no-op on v5e/v6e).
    if rows > 64:
        half = -(-rows // 2)           # ceil(rows / 2)
        half = -(-half // 32) * 32     # round up to a multiple of 32
        max_rows = min(max_rows, half)
    block_rows = min(rows, max_rows)   # full extent is always legal
    grid = (pl.cdiv(rows, block_rows),)  # partial trailing block is masked by Pallas

    out = pl.pallas_call(
        _copy_kernel,
        out_shape=jax.ShapeDtypeStruct((rows, lane_w), x.dtype),
        grid=grid,
        in_specs=[pl.BlockSpec((block_rows, lane_w), lambda i: (i, 0))],
        out_specs=pl.BlockSpec((block_rows, lane_w), lambda i: (i, 0)),
        compiler_params=pltpu.CompilerParams(
            dimension_semantics=("parallel",),
            vmem_limit_bytes=_VMEM_LIMIT_BYTES,
        ),
        cost_estimate=pl.CostEstimate(
            flops=0, transcendentals=0, bytes_accessed=2 * n * itemsize),
    )(slab)

    return out.reshape(orig_shape)


def identity_pallas(x: jax.Array, *, copy: bool = True) -> jax.Array:
    """Identity forward pass (y = x), matching torch nn.Identity.

    copy=True  (default): fresh output buffer via a lane-dense tiled Pallas copy.
    copy=False: return x directly -- exact, zero HBM traffic, and strictly better
                than any aliased pallas_call for non-donated inputs.
    """
    if x.size == 0 or not copy:
        return x
    return _identity_copy(x)


if __name__ == "__main__":
    key = jax.random.PRNGKey(0)
    # Small NCHW input consistent with the module's expected usage.
    x = jax.random.normal(key, (2, 4, 16, 16), dtype=jnp.float32)

    # Pallas copy kernel (default path).
    y = jax.block_until_ready(identity_pallas(x))
    assert y.shape == x.shape and y.dtype == x.dtype
    assert bool(jnp.all(y == x))

    # Zero-cost pass-through path.
    y_pass = identity_pallas(x, copy=False)
    assert y_pass is x

    # Sub-32-bit dtype sanity check (bf16 sublane packing).
    xb = x.astype(jnp.bfloat16)
    yb = jax.block_until_ready(identity_pallas(xb))
    assert yb.shape == xb.shape and yb.dtype == xb.dtype
    assert bool(jnp.all(yb == xb))

    # Ragged size (not a multiple of 128): whole-array block fallback, no pad/slice.
    xr = jax.random.normal(jax.random.PRNGKey(0), (3, 5, 7), dtype=jnp.float32)
    yr = jax.block_until_ready(identity_pallas(xr))
    assert yr.shape == xr.shape and yr.dtype == xr.dtype
    assert bool(jnp.all(yr == xr))

    print("KERNEL_OK")
</pallas_src>

<mosaic_0001>
module attributes {stable_mosaic.version = 11 : i64} {
  func.func @_copy_kernel(%arg0: i32, %arg1: memref<1x2048xf32, #tpu.memory_space<vmem>>, %arg2: memref<1x2048xf32, #tpu.memory_space<vmem>>) attributes {dimension_semantics = [#tpu.dimension_semantics<parallel>], iteration_bounds = array<i64: 1>, scalar_prefetch = 0 : i64, scratch_operands = 0 : i64, tpu.core_type = #tpu.core_type<tc>, window_params = [{transform_indices = @transform_0, window_bounds = array<i64: 1, 2048>}, {transform_indices = @transform_1, window_bounds = array<i64: 1, 2048>}]} {
    %c0 = arith.constant 0 : index
    %c0_0 = arith.constant 0 : index
    %0 = vector.load %arg1[%c0, %c0_0] : memref<1x2048xf32, #tpu.memory_space<vmem>>, vector<1x2048xf32>
    %c0_1 = arith.constant 0 : index
    %c0_2 = arith.constant 0 : index
    %1 = vector.load %arg2[%c0_1, %c0_2] : memref<1x2048xf32, #tpu.memory_space<vmem>>, vector<1x2048xf32>
    tpu.vector_store %arg2[%c0_1, %c0_2], %0 {strides = array<i32>} : memref<1x2048xf32, #tpu.memory_space<vmem>>, vector<1x2048xf32>,
    return
  }
  func.func @transform_0(%arg0: i32) -> (i32, i32) {
    %c0_i32 = arith.constant 0 : i32
    %c0_i32_0 = arith.constant 0 : i32
    return %arg0, %c0_i32 : i32, i32
  }
  func.func @transform_1(%arg0: i32) -> (i32, i32) {
    %c0_i32 = arith.constant 0 : i32
    %c0_i32_0 = arith.constant 0 : i32
    return %arg0, %c0_i32 : i32, i32
  }
}

</mosaic_0001>

<llo_original>
// kernel: tpu_custom_call.1
$region0: #{tpu_custom_call.1}
  #allocation0 [shape = 'u32[]', space=smem, size = 0x4, offset = 0x4, fixed_abs, tag = 'smem constant byte address 0x4 - core index']
  #allocation1 [shape = 'u32[144,128]{1,0:T(1,128)}', space=vmem, size = 0x12000, scoped, tag = 'internal scratch']
  %s0 = inlined_call_operand.hbm [shape: f32[1,2048], index: 0, kind: input, shape index: {}]
  %s1 = inlined_call_operand.hbm [shape: f32[1,2048], index: 1, kind: output, shape index: {}]
  %s2 = sld [smem:[#allocation0]]
  $region18: #{tpu_custom_call.1} parent=0
    _
  %s4 = ssub.s32 1, %s2
  %s5 = scalar_select 0, %s4, %s2
  $region1: #{tpu_custom_call.1} parent=0
    #allocation2 [shape = 'u8[8192]{0}', space=vmem, size = 0x2000, scoped, tag = 'input window, operand 0, single buffered']
    #allocation3 [shape = 's32[1]{0}', space=sflag, size = 0x4, scoped, tag = 'scoped memory for tpu_custom_call.1']
    #allocation4 [shape = 's32[1]{0}', space=sflag, size = 0x4, scoped, tag = 'scoped memory for tpu_custom_call.1']
    #allocation5 [shape = 'u8[8192]{0}', space=vmem, size = 0x2000, scoped, tag = 'output window, operand 0, single buffered']
    %6 = vsyncpa [#allocation3], 0
    %7 = vsyncpa [#allocation4], 0
    // Predicated region
    $region2: #{tpu_custom_call.1} parent=1 // pred_check
      _
    $region3: #{tpu_custom_call.1} parent=1 // pred_check_branch
      %9 = sbr.rel (0) target = $region5
    $region4: #{tpu_custom_call.1} parent=1 // pred_region
      %s11 = ssub.s32 256, 256
      %12 = vsyncadd [#allocation3], %s11
      %s14 = sshll.u32 [#allocation2], 4
      %s15 = int_to_ptr.vmem [resolvable:$true] %s14
      %17 = dma.hbm_to_vmem [thread:$0]  %s0, 256, %s15, [#allocation3]
    $region5: #{tpu_custom_call.1} parent=1 // pred_fallthru
      _
    // Predicated region
    $region6: #{tpu_custom_call.1} parent=1 // pred_check
      _
    $region7: #{tpu_custom_call.1} parent=1 // pred_check_branch
      %19 = sbr.rel (0) target = $region9
    $region8: #{tpu_custom_call.1} parent=1 // pred_region
      %20 = dma.done [#allocation3], 256
    $region9: #{tpu_custom_call.1} parent=1 // pred_fallthru
      _
    %v21 = vld [vmem:[#allocation2] sm:$0xff]
    %v22 = vld [vmem:[#allocation2 + $0x8] sm:$0xff]
    %23 = vst [vmem:[#allocation5] sm:$0xff] %v21
    %24 = vst [vmem:[#allocation5 + $0x8] sm:$0xff] %v22
    // Predicated region
    $region10: #{tpu_custom_call.1} parent=1 // pred_check
      _
    $region11: #{tpu_custom_call.1} parent=1 // pred_check_branch
      %26 = sbr.rel (0) target = $region13
    $region12: #{tpu_custom_call.1} parent=1 // pred_region
      %s28 = ssub.s32 256, 256
      %29 = vsyncadd [#allocation4], %s28
      %s31 = sshll.u32 [#allocation5], 4
      %s32 = int_to_ptr.vmem [resolvable:$true] %s31
      %34 = dma.vmem_to_hbm [thread:$0]  %s32, 256, %s1, [#allocation4]
    $region13: #{tpu_custom_call.1} parent=1 // pred_fallthru
      _
    // Predicated region
    $region14: #{tpu_custom_call.1} parent=1 // pred_check
      _
    $region15: #{tpu_custom_call.1} parent=1 // pred_check_branch
      %36 = sbr.rel (0) target = $region17
    $region16: #{tpu_custom_call.1} parent=1 // pred_region
      %37 = dma.done [#allocation4], 256
    $region17: #{tpu_custom_call.1} parent=1 // pred_fallthru
      _
    %38 = vsyncpa [#allocation3], 1
    %39 = vsyncpa [#allocation4], 1

</llo_original>
